<compile_context>
chip_gen: v5e
topology: v5e:2x2
jax: 0.10.0
libtpu: 0.0.40
codegen_flags: <defaults>
</compile_context>

<pallas_src>
import functools

import jax
import jax.numpy as jnp
from jax import lax
from jax.experimental import pallas as pl
from jax.experimental.pallas import tpu as pltpu


def _group_norm_kernel(x_ref, gamma_ref, beta_ref, o_ref, *, eps, inv_count):
    # x_ref block: (bn, bg, R, L) -- bn batches x bg groups; each group slab is
    # an (R, L) tile with L (a multiple of 128) on the lane axis.
    x = x_ref[...].astype(jnp.float32)

    # Single-pass per-(batch, group) statistics over the (R, L) slab.  R and L
    # are the full (unpadded) slab extents, so dividing by R*L is exact.
    s = jnp.sum(x, axis=3, keepdims=True)          # lane reduction
    s = jnp.sum(s, axis=2, keepdims=True)          # sublane reduction -> (bn, bg, 1, 1)
    s2 = jnp.sum(x * x, axis=3, keepdims=True)
    s2 = jnp.sum(s2, axis=2, keepdims=True)        # (bn, bg, 1, 1)

    mean = s * inv_count
    var = jnp.maximum(s2 * inv_count - mean * mean, 0.0)
    inv = lax.rsqrt(var + eps)

    # Fused affine epilogue: one mul + one add per element against per-row
    # scalars; no block-sized centered temporary is materialized.
    gamma = gamma_ref[...].astype(jnp.float32)[None]   # (1, bg, R, 1)
    beta = beta_ref[...].astype(jnp.float32)[None]     # (1, bg, R, 1)
    scale = inv * gamma                                # (bn, bg, R, 1)
    shift = beta - mean * scale                        # (bn, bg, R, 1)

    o_ref[...] = (x * scale + shift).astype(o_ref.dtype)


def _pick_lane_width(cg, hw):
    """Lane extent L: a multiple of 128 dividing hw, maximizing sublane density."""
    if hw % 128 != 0:
        # TODO(synk): for H*W not divisible by 128 keep the plain (C/G, H*W)
        # layout (lane-masked but correct) instead of a dense repack.
        return hw
    best_key, best_lane = None, 128
    for lane in range(128, hw + 1, 128):
        if hw % lane != 0:
            continue
        rows = (cg * hw) // lane
        dense = rows % 8 == 0
        # Prefer fully dense sublanes (rows % 8 == 0); among dense layouts take
        # the widest rows (compact affine params), otherwise the narrowest
        # (maximize rows -> least relative sublane padding).
        key = (dense, lane if dense else -lane)
        if best_key is None or key > best_key:
            best_key, best_lane = key, lane
    return best_lane


def _largest_divisor_leq(value, cap):
    cap = max(1, min(value, cap))
    for d in range(cap, 0, -1):
        if value % d == 0:
            return d
    return 1


def _vmem_capacity_bytes():
    try:
        return int(pltpu.get_tpu_info().vmem_capacity_bytes)
    except Exception:
        return 64 * 1024 * 1024   # conservative fallback: v7x per-core VMEM


def group_norm(x, gamma, beta, *, num_groups, eps=1e-6):
    """GroupNorm forward. x: (N, C, H, W), gamma/beta: (C,)."""
    n, c, h, w = x.shape
    assert c % num_groups == 0, "num_channels must be divisible by num_groups"
    g = num_groups
    cg = c // g
    hw = h * w

    # Sublane/lane-dense re-layout: each (batch, group) slab of cg*hw elements
    # becomes an (R, L) tile with L on the lane axis.
    lane = _pick_lane_width(cg, hw)
    rep = hw // lane                       # spatial rows per channel
    rows = cg * rep                        # R

    x4 = x.reshape(n, g, rows, lane)
    # Affine params expanded per slab row: row r of a slab holds channel r // rep.
    gamma_r = jnp.repeat(gamma.reshape(g, cg), rep, axis=1).reshape(g, rows, 1)
    beta_r = jnp.repeat(beta.reshape(g, cg), rep, axis=1).reshape(g, rows, 1)

    # --- VMEM-footprint-driven block sizing (sublane/lane padding included). ---
    itemsize = jnp.dtype(x.dtype).itemsize
    rows_pad = ((rows + 7) // 8) * 8
    lane_pad = ((lane + 127) // 128) * 128
    slab_io = rows_pad * lane_pad * itemsize       # one slab, input/output dtype
    slab_f32 = rows_pad * lane_pad * 4             # one slab, f32 temporaries
    param_pad = 2 * 2 * rows_pad * 128 * 4         # gamma+beta, 2 buffers, lane-padded
    # Steady-state footprint per resident slab: double-buffered input + output
    # blocks, ~2 f32 block temporaries, plus (conservatively) the affine params.
    per_slab = 2 * slab_io + 2 * slab_io + 2 * slab_f32 + param_pad

    vmem_cap = _vmem_capacity_bytes()
    budget = int(0.4 * vmem_cap)                   # headroom for compiler scratch
    max_slabs = max(1, budget // per_slab)

    bg = _largest_divisor_leq(g, max_slabs)
    bn = _largest_divisor_leq(n, max(1, max_slabs // bg))

    # Guarantee >= 2 grid blocks (megacore sharding on v7x) whenever possible.
    while (g // bg) * (n // bn) < 2 and (bn > 1 or bg > 1):
        if bn > 1:
            bn = _largest_divisor_leq(n, bn - 1)
        else:
            bg = _largest_divisor_leq(g, bg - 1)

    needed = bn * bg * (4 * slab_io + 2 * slab_f32) + bg * param_pad
    vmem_limit = min(max(needed + (8 << 20), 32 << 20), int(0.9 * vmem_cap))
    # TODO(synk): if one (batch, group) slab alone exceeds the VMEM budget, add
    # a third (reduction) grid axis over rows with a scratch accumulator and a
    # pl.when finalize instead of shipping a single oversized block.

    kernel = functools.partial(
        _group_norm_kernel, eps=eps, inv_count=1.0 / float(cg * hw))

    out4 = pl.pallas_call(
        kernel,
        out_shape=jax.ShapeDtypeStruct((n, g, rows, lane), x.dtype),
        grid_spec=pltpu.PrefetchScalarGridSpec(
            num_scalar_prefetch=0,
            # Batch-block axis is innermost: the gamma/beta block index depends
            # only on the group-block axis, so the affine params stay resident
            # across consecutive grid steps.
            grid=(g // bg, n // bn),
            in_specs=[
                pl.BlockSpec((bn, bg, rows, lane), lambda j, i: (i, j, 0, 0)),
                pl.BlockSpec((bg, rows, 1), lambda j, i: (j, 0, 0)),
                pl.BlockSpec((bg, rows, 1), lambda j, i: (j, 0, 0)),
            ],
            out_specs=pl.BlockSpec((bn, bg, rows, lane), lambda j, i: (i, j, 0, 0)),
        ),
        compiler_params=pltpu.CompilerParams(
            dimension_semantics=("parallel", "parallel"),
            vmem_limit_bytes=int(vmem_limit),
        ),
    )(x4, gamma_r, beta_r)

    return out4.reshape(n, c, h, w)


def group_norm_ref(x, gamma, beta, *, num_groups, eps=1e-6):
    """Pure-JAX reference (mirrors torch.nn.GroupNorm, two-pass statistics)."""
    n, c, h, w = x.shape
    xg = x.reshape(n, num_groups, -1).astype(jnp.float32)
    mean = jnp.mean(xg, axis=-1, keepdims=True)
    var = jnp.mean((xg - mean) ** 2, axis=-1, keepdims=True)
    xhat = ((xg - mean) * lax.rsqrt(var + eps)).reshape(n, c, h, w)
    return (xhat * gamma.reshape(1, c, 1, 1) + beta.reshape(1, c, 1, 1)).astype(x.dtype)


if __name__ == "__main__":
    # Spec module config: num_channels divisible by num_groups; eps default 1e-06.
    num_channels = 8
    num_groups = 4
    eps = 1e-6

    key = jax.random.PRNGKey(0)
    kx, kg, kb = jax.random.split(key, 3)

    # Input: NCHW, batch=2, channels=8, spatial=16x16.
    x = jax.random.normal(kx, (2, num_channels, 16, 16), dtype=jnp.float32)

    # Affine parameters (perturbed from the ones/zeros default to exercise the path).
    gamma = 1.0 + 0.1 * jax.random.normal(kg, (num_channels,), dtype=jnp.float32)
    beta = 0.1 * jax.random.normal(kb, (num_channels,), dtype=jnp.float32)

    out = group_norm(x, gamma, beta, num_groups=num_groups, eps=eps)
    out = jax.block_until_ready(out)

    ref = group_norm_ref(x, gamma, beta, num_groups=num_groups, eps=eps)
    assert out.shape == x.shape and out.dtype == x.dtype
    assert jnp.allclose(out, ref, atol=2e-5, rtol=2e-5), "mismatch vs reference"

    print("KERNEL_OK")
</pallas_src>

<mosaic_0001>
module attributes {stable_mosaic.version = 11 : i64} {
  func.func @_group_norm_kernel(%arg0: i32, %arg1: i32, %arg2: memref<1x4x4x128xf32, #tpu.memory_space<vmem>>, %arg3: memref<4x4x1xf32, #tpu.memory_space<vmem>>, %arg4: memref<4x4x1xf32, #tpu.memory_space<vmem>>, %arg5: memref<1x4x4x128xf32, #tpu.memory_space<vmem>>) attributes {dimension_semantics = [#tpu.dimension_semantics<parallel>, #tpu.dimension_semantics<parallel>], iteration_bounds = array<i64: 1, 2>, scalar_prefetch = 0 : i64, scratch_operands = 0 : i64, tpu.core_type = #tpu.core_type<tc>, window_params = [{transform_indices = @transform_0, window_bounds = array<i64: 1, 4, 4, 128>}, {transform_indices = @transform_1, window_bounds = array<i64: 4, 4, 1>}, {transform_indices = @transform_2, window_bounds = array<i64: 4, 4, 1>}, {transform_indices = @transform_3, window_bounds = array<i64: 1, 4, 4, 128>}]} {
    %c0 = arith.constant 0 : index
    %c0_0 = arith.constant 0 : index
    %c0_1 = arith.constant 0 : index
    %c0_2 = arith.constant 0 : index
    %0 = vector.load %arg2[%c0, %c0_0, %c0_1, %c0_2] : memref<1x4x4x128xf32, #tpu.memory_space<vmem>>, vector<1x4x4x128xf32>
    %cst = arith.constant dense<0.000000e+00> : vector<1x4x4xf32>
    %1 = vector.multi_reduction <add>, %0, %cst [3] : vector<1x4x4x128xf32> to vector<1x4x4xf32>
    %2 = vector.shape_cast %1 : vector<1x4x4xf32> to vector<1x4x4x1xf32>
    %cst_3 = arith.constant dense<0.000000e+00> : vector<1x4x1xf32>
    %3 = vector.multi_reduction <add>, %2, %cst_3 [2] : vector<1x4x4x1xf32> to vector<1x4x1xf32>
    %4 = vector.shape_cast %3 : vector<1x4x1xf32> to vector<1x4x1x1xf32>
    %5 = arith.mulf %0, %0 : vector<1x4x4x128xf32>
    %cst_4 = arith.constant dense<0.000000e+00> : vector<1x4x4xf32>
    %6 = vector.multi_reduction <add>, %5, %cst_4 [3] : vector<1x4x4x128xf32> to vector<1x4x4xf32>
    %7 = vector.shape_cast %6 : vector<1x4x4xf32> to vector<1x4x4x1xf32>
    %cst_5 = arith.constant dense<0.000000e+00> : vector<1x4x1xf32>
    %8 = vector.multi_reduction <add>, %7, %cst_5 [2] : vector<1x4x4x1xf32> to vector<1x4x1xf32>
    %9 = vector.shape_cast %8 : vector<1x4x1xf32> to vector<1x4x1x1xf32>
    %cst_6 = arith.constant 0.001953125 : f32
    %10 = vector.broadcast %cst_6 : f32 to vector<1x4x1x1xf32>
    %11 = arith.mulf %4, %10 : vector<1x4x1x1xf32>
    %cst_7 = arith.constant 0.001953125 : f32
    %12 = vector.broadcast %cst_7 : f32 to vector<1x4x1x1xf32>
    %13 = arith.mulf %9, %12 : vector<1x4x1x1xf32>
    %14 = arith.mulf %11, %11 : vector<1x4x1x1xf32>
    %15 = arith.subf %13, %14 : vector<1x4x1x1xf32>
    %cst_8 = arith.constant 0.000000e+00 : f32
    %16 = vector.broadcast %cst_8 : f32 to vector<1x4x1x1xf32>
    %17 = arith.maximumf %15, %16 : vector<1x4x1x1xf32>
    %cst_9 = arith.constant 9.99999997E-7 : f32
    %18 = vector.broadcast %cst_9 : f32 to vector<1x4x1x1xf32>
    %19 = arith.addf %17, %18 : vector<1x4x1x1xf32>
    %20 = math.rsqrt %19 : vector<1x4x1x1xf32>
    %c0_10 = arith.constant 0 : index
    %c0_11 = arith.constant 0 : index
    %c0_12 = arith.constant 0 : index
    %21 = vector.load %arg3[%c0_10, %c0_11, %c0_12] : memref<4x4x1xf32, #tpu.memory_space<vmem>>, vector<4x4x1xf32>
    %22 = vector.shape_cast %21 : vector<4x4x1xf32> to vector<1x4x4x1xf32>
    %c0_13 = arith.constant 0 : index
    %c0_14 = arith.constant 0 : index
    %c0_15 = arith.constant 0 : index
    %23 = vector.load %arg4[%c0_13, %c0_14, %c0_15] : memref<4x4x1xf32, #tpu.memory_space<vmem>>, vector<4x4x1xf32>
    %24 = vector.shape_cast %23 : vector<4x4x1xf32> to vector<1x4x4x1xf32>
    %25 = vector.broadcast %20 : vector<1x4x1x1xf32> to vector<1x4x4x1xf32>
    %26 = arith.mulf %25, %22 : vector<1x4x4x1xf32>
    %27 = vector.broadcast %11 : vector<1x4x1x1xf32> to vector<1x4x4x1xf32>
    %28 = arith.mulf %27, %26 : vector<1x4x4x1xf32>
    %29 = arith.subf %24, %28 : vector<1x4x4x1xf32>
    %30 = vector.broadcast %26 : vector<1x4x4x1xf32> to vector<1x4x4x128xf32>
    %31 = arith.mulf %0, %30 : vector<1x4x4x128xf32>
    %32 = vector.broadcast %29 : vector<1x4x4x1xf32> to vector<1x4x4x128xf32>
    %33 = arith.addf %31, %32 : vector<1x4x4x128xf32>
    %c0_16 = arith.constant 0 : index
    %c0_17 = arith.constant 0 : index
    %c0_18 = arith.constant 0 : index
    %c0_19 = arith.constant 0 : index
    %34 = vector.load %arg5[%c0_16, %c0_17, %c0_18, %c0_19] : memref<1x4x4x128xf32, #tpu.memory_space<vmem>>, vector<1x4x4x128xf32>
    tpu.vector_store %arg5[%c0_16, %c0_17, %c0_18, %c0_19], %33 {strides = array<i32>} : memref<1x4x4x128xf32, #tpu.memory_space<vmem>>, vector<1x4x4x128xf32>,
    return
  }
  func.func @transform_0(%arg0: i32, %arg1: i32) -> (i32, i32, i32, i32) {
    %c0_i32 = arith.constant 0 : i32
    %c0_i32_0 = arith.constant 0 : i32
    %c0_i32_1 = arith.constant 0 : i32
    return %arg1, %arg0, %c0_i32, %c0_i32_0 : i32, i32, i32, i32
  }
  func.func @transform_1(%arg0: i32, %arg1: i32) -> (i32, i32, i32) {
    %c0_i32 = arith.constant 0 : i32
    %c0_i32_0 = arith.constant 0 : i32
    %c0_i32_1 = arith.constant 0 : i32
    return %arg0, %c0_i32, %c0_i32_0 : i32, i32, i32
  }
  func.func @transform_2(%arg0: i32, %arg1: i32) -> (i32, i32, i32) {
    %c0_i32 = arith.constant 0 : i32
    %c0_i32_0 = arith.constant 0 : i32
    %c0_i32_1 = arith.constant 0 : i32
    return %arg0, %c0_i32, %c0_i32_0 : i32, i32, i32
  }
  func.func @transform_3(%arg0: i32, %arg1: i32) -> (i32, i32, i32, i32) {
    %c0_i32 = arith.constant 0 : i32
    %c0_i32_0 = arith.constant 0 : i32
    %c0_i32_1 = arith.constant 0 : i32
    return %arg1, %arg0, %c0_i32, %c0_i32_0 : i32, i32, i32, i32
  }
}

</mosaic_0001>

<llo_original>
// kernel: tpu_custom_call.1
$region0: #{tpu_custom_call.1}
  #allocation0 [shape = 'u32[]', space=smem, size = 0x4, offset = 0x4, fixed_abs, tag = 'smem constant byte address 0x4 - core index']
  #allocation1 [shape = 'u32[72,128]{1,0:T(1,128)}', space=vmem, size = 0x9000, scoped, tag = 'internal scratch']
  %s0 = inlined_call_operand.vmem [shape: f32[2,4,4,128], index: 0, kind: input, shape index: {}]
  %s1 = inlined_call_operand.vmem [shape: f32[4,4,1], index: 1, kind: input, shape index: {}]
  %s2 = inlined_call_operand.vmem [shape: f32[4,4,1], index: 2, kind: input, shape index: {}]
  %s3 = inlined_call_operand.hbm [shape: f32[2,4,4,128], index: 3, kind: output, shape index: {}]
  %s4 = sld [smem:[#allocation0]]
  $region45: #{tpu_custom_call.1} parent=0
    _
  %s6 = ssub.s32 1, %s4
  %s7 = scalar_select 0, %s6, %s4
  $region1: #{tpu_custom_call.1} parent=0
    #allocation2 [shape = 'u8[16384]{0}', space=vmem, size = 0x4000, scoped, tag = 'output window, operand 0']
    #allocation3 [shape = 's32[2]{0}', space=sflag, size = 0x8, scoped, tag = 'scoped memory for tpu_custom_call.1']
    %8 = vsyncpa [#allocation3], 0
    %s9 = scalar_lea.sflag [#allocation3], 1
    %10 = vsyncpa %s9, 0
    loop: start=0, step=1, limit=4
    $region2: #{tpu_custom_call.1} parent=1 // loop_pre_header
      _
    $region3: #{tpu_custom_call.1} parent=1 // loop_header
      %s12 = sphi 0, %s16
      %p13 = scmp.ge.s32.totalorder %s12, 4
      %s19 = sphi 0, %s31
      %s20 = sphi 0, %s27
      %s21 = sphi 0, %s19
      %s22 = sphi 0, %s20
      %s23 = sphi 0, %s21
      %s24 = sphi 0, %s22
      %s36 = sphi 0, %s38
      %s39 = sphi 0, %s36
      %s40 = sphi 0, %s39
      %s56 = sphi 0, %s40
      %s62 = sphi 0, %s64
      %s65 = sphi 0, %s62
      %s66 = sphi 0, %s65
      %s82 = sphi 0, %s66
      %s88 = sphi 0, %s90
      %s91 = sphi 0, %s88
      %s92 = sphi 0, %s91
      %s108 = sphi 0, %s92
      %s116 = sphi 0, %s118
      %s119 = sphi 0, %s116
      %s120 = sphi 0, %s119
      %s136 = sphi 0, %s120
    $region4: #{tpu_custom_call.1} parent=1 // loop_header_branch
      %15 = sbr.rel (%p13) target = $region8
    $region5: #{tpu_custom_call.1} parent=1 // loop_body
      %s17 = ssub.s32 %s12, 1
      %s18 = ssub.s32 %s12, 2
      %s25 = sadd.s32 1, %s20
      %p26 = scmp.ge.s32.totalorder %s25, 2
      %s27 = scalar_select %p26, 0, %s25
      %s28 = sadd.s32 1, %s19
      %s29 = scalar_select %p26, %s28, %s19
      %p30 = scmp.ge.s32.totalorder %s29, 1
      %s31 = scalar_select %p30, 0, %s29
      %s32 = ssub.s32 %s20, %s27
      %s33 = ssub.s32 %s19, %s31
      %s34 = sor.u32 %s32, %s33
      %p35 = scmp.eq.s32.totalorder %s34, 0
      %s37 = sadd.s32 %s36, 1
      %s38 = scalar_select %p35, %s36, %s37
      %p41 = pneg %p35
      %p42 = scmp.eq.s32.totalorder %s12, 1
      %p43 = por %p41, %p42
      %p44 = scmp.ne.s32.totalorder %s36, %s39
      %p45 = scmp.eq.s32.totalorder %s12, 0
      %p46 = por %p44, %p45
      %p47 = scmp.ne.s32.totalorder %s36, %s39
      %p48 = scmp.eq.s32.totalorder %s17, 1
      %p49 = por %p47, %p48
      %p50 = scmp.ne.s32.totalorder %s39, %s40
      %p51 = scmp.eq.s32.totalorder %s17, 0
      %p52 = por %p50, %p51
      %p53 = scmp.ne.s32.totalorder %s39, %s40
      %p54 = scmp.eq.s32.totalorder %s18, 1
      %p55 = por %p53, %p54
      %p57 = scmp.ne.s32.totalorder %s40, %s56
      %p58 = scmp.eq.s32.totalorder %s18, 0
      %p59 = por %p57, %p58
      %s60 = ssub.s32 %s19, %s31
      %p61 = scmp.eq.s32.totalorder %s60, 0
      %s63 = sadd.s32 %s62, 1
      %s64 = scalar_select %p61, %s62, %s63
      %p67 = pneg %p61
      %p68 = scmp.eq.s32.totalorder %s12, 1
      %p69 = por %p67, %p68
      %p70 = scmp.ne.s32.totalorder %s62, %s65
      %p71 = scmp.eq.s32.totalorder %s12, 0
      %p72 = por %p70, %p71
      %p73 = scmp.ne.s32.totalorder %s62, %s65
      %p74 = scmp.eq.s32.totalorder %s17, 1
      %p75 = por %p73, %p74
      %p76 = scmp.ne.s32.totalorder %s65, %s66
      %p77 = scmp.eq.s32.totalorder %s17, 0
      %p78 = por %p76, %p77
      %p79 = scmp.ne.s32.totalorder %s65, %s66
      %p80 = scmp.eq.s32.totalorder %s18, 1
      %p81 = por %p79, %p80
      %p83 = scmp.ne.s32.totalorder %s66, %s82
      %p84 = scmp.eq.s32.totalorder %s18, 0
      %p85 = por %p83, %p84
      %s86 = ssub.s32 %s19, %s31
      %p87 = scmp.eq.s32.totalorder %s86, 0
      %s89 = sadd.s32 %s88, 1
      %s90 = scalar_select %p87, %s88, %s89
      %p93 = pneg %p87
      %p94 = scmp.eq.s32.totalorder %s12, 1
      %p95 = por %p93, %p94
      %p96 = scmp.ne.s32.totalorder %s88, %s91
      %p97 = scmp.eq.s32.totalorder %s12, 0
      %p98 = por %p96, %p97
      %p99 = scmp.ne.s32.totalorder %s88, %s91
      %p100 = scmp.eq.s32.totalorder %s17, 1
      %p101 = por %p99, %p100
      %p102 = scmp.ne.s32.totalorder %s91, %s92
      %p103 = scmp.eq.s32.totalorder %s17, 0
      %p104 = por %p102, %p103
      %p105 = scmp.ne.s32.totalorder %s91, %s92
      %p106 = scmp.eq.s32.totalorder %s18, 1
      %p107 = por %p105, %p106
      %p109 = scmp.ne.s32.totalorder %s92, %s108
      %p110 = scmp.eq.s32.totalorder %s18, 0
      %p111 = por %p109, %p110
      %s112 = ssub.s32 %s20, %s27
      %s113 = ssub.s32 %s19, %s31
      %s114 = sor.u32 %s112, %s113
      %p115 = scmp.eq.s32.totalorder %s114, 0
      %s117 = sadd.s32 %s116, 1
      %s118 = scalar_select %p115, %s116, %s117
      %p121 = pneg %p115
      %p122 = scmp.eq.s32.totalorder %s12, 1
      %p123 = por %p121, %p122
      %p124 = scmp.ne.s32.totalorder %s116, %s119
      %p125 = scmp.eq.s32.totalorder %s12, 0
      %p126 = por %p124, %p125
      %p127 = scmp.ne.s32.totalorder %s116, %s119
      %p128 = scmp.eq.s32.totalorder %s17, 1
      %p129 = por %p127, %p128
      %p130 = scmp.ne.s32.totalorder %s119, %s120
      %p131 = scmp.eq.s32.totalorder %s17, 0
      %p132 = por %p130, %p131
      %p133 = scmp.ne.s32.totalorder %s119, %s120
      %p134 = scmp.eq.s32.totalorder %s18, 1
      %p135 = por %p133, %p134
      %p137 = scmp.ne.s32.totalorder %s120, %s136
      %p138 = scmp.eq.s32.totalorder %s18, 0
      %p139 = por %p137, %p138
      %p140 = scmp.le.s32.totalorder 1, %s12
      %p141 = scmp.lt.s32.totalorder %s12, 3
      %p142 = pnand %p140, %p141
      %p143 = pneg %p142
      // Predicated region
      $region9: #{tpu_custom_call.1} parent=5 // pred_check
        _
      $region10: #{tpu_custom_call.1} parent=5 // pred_check_branch
        %145 = sbr.rel (%p142) target = $region12
      $region11: #{tpu_custom_call.1} parent=5 // pred_region
        %s146 = ssub.s32 %s12, 1
        // Predicated region
        $region13: #{tpu_custom_call.1} parent=11 // pred_check
          %p147 = pneg %p78
        $region14: #{tpu_custom_call.1} parent=11 // pred_check_branch
          %149 = sbr.rel (%p147) target = $region16
        $region15: #{tpu_custom_call.1} parent=11 // pred_region
          %s150 = smul.u32 4, %s21
          %p151 = scmp.lt.s32.totalorder %s150, 3
          %s152 = scalar_select %p151, %s150, 3
          %s153 = smul.addr %s152, 4
          %s154 = scalar_lea.vmem %s1, %s153
          %s155 = smul.u32 4, %s21
        $region16: #{tpu_custom_call.1} parent=11 // pred_fallthru
          _
        // Predicated region
        $region17: #{tpu_custom_call.1} parent=11 // pred_check
          %p156 = pneg %p104
        $region18: #{tpu_custom_call.1} parent=11 // pred_check_branch
          %158 = sbr.rel (%p156) target = $region20
        $region19: #{tpu_custom_call.1} parent=11 // pred_region
          %s159 = smul.u32 4, %s21
          %p160 = scmp.lt.s32.totalorder %s159, 3
          %s161 = scalar_select %p160, %s159, 3
          %s162 = smul.addr %s161, 4
          %s163 = scalar_lea.vmem %s2, %s162
          %s164 = smul.u32 4, %s21
        $region20: #{tpu_custom_call.1} parent=11 // pred_fallthru
          _
      $region12: #{tpu_custom_call.1} parent=5 // pred_fallthru
        _
      %p165 = scmp.lt.s32.totalorder %s12, 2
      // Predicated region
      $region21: #{tpu_custom_call.1} parent=5 // pred_check
        %p166 = pneg %p165
      $region22: #{tpu_custom_call.1} parent=5 // pred_check_branch
        %168 = sbr.rel (%p166) target = $region24
      $region23: #{tpu_custom_call.1} parent=5 // pred_region
        // Predicated region
        $region25: #{tpu_custom_call.1} parent=23 // pred_check
          %p169 = pneg %p46
        $region26: #{tpu_custom_call.1} parent=23 // pred_check_branch
          %171 = sbr.rel (%p169) target = $region28
        $region27: #{tpu_custom_call.1} parent=23 // pred_region
          %s172 = smul.u32 4, %s19
          %p173 = scmp.lt.s32.totalorder %s20, 1
          %s174 = scalar_select %p173, %s20, 1
          %p175 = scmp.lt.s32.totalorder %s172, 3
          %s176 = scalar_select %p175, %s172, 3
          %s177 = smul.addr %s174, 4
          %s178 = sadd.s32 %s176, %s177
          %s179 = smul.addr %s178, 4
          %s180 = scalar_lea.vmem %s0, %s179
          %s181 = smul.u32 4, %s19
        $region28: #{tpu_custom_call.1} parent=23 // pred_fallthru
          _
      $region24: #{tpu_custom_call.1} parent=5 // pred_fallthru
        _
      %p182 = scmp.le.s32.totalorder 1, %s12
      %p183 = scmp.lt.s32.totalorder %s12, 3
      %p184 = pnand %p182, %p183
      %p185 = pneg %p184
      // Predicated region
      $region29: #{tpu_custom_call.1} parent=5 // pred_check
        _
      $region30: #{tpu_custom_call.1} parent=5 // pred_check_branch
        %187 = sbr.rel (%p184) target = $region32
      $region31: #{tpu_custom_call.1} parent=5 // pred_region
        %s188 = ssub.s32 %s12, 1
        %s189 = smul.u32 4, %s21
        %p190 = scmp.lt.s32.totalorder %s22, 1
        %s191 = scalar_select %p190, %s22, 1
        %p192 = scmp.lt.s32.totalorder %s189, 3
        %s193 = scalar_select %p192, %s189, 3
        %s194 = smul.addr %s191, 4
        %s195 = sadd.s32 %s193, %s194
        %s196 = smul.addr %s195, 4
        %s197 = scalar_lea.vmem %s0, %s196
        %p198 = pneg %p52
        %p199 = pneg %p49
        %s200 = smul.u32 4, %s21
        %p201 = scmp.lt.s32.totalorder %s200, 3
        %s202 = scalar_select %p201, %s200, 3
        %s203 = smul.addr %s202, 4
        %s204 = scalar_lea.vmem %s1, %s203
        %p205 = pneg %p78
        %p206 = pneg %p75
        %s207 = smul.u32 4, %s21
        %p208 = scmp.lt.s32.totalorder %s207, 3
        %s209 = scalar_select %p208, %s207, 3
        %s210 = smul.addr %s209, 4
        %s211 = scalar_lea.vmem %s2, %s210
        %p212 = pneg %p104
        %p213 = pneg %p101
        %p214 = pneg %p132
        %p215 = pneg %p129
        %s216 = sand.u32 %s119, 1
        %s217 = scalar_lea.sflag [#allocation3], %s216
        %s218 = sand.u32 %s119, 1
        %s219 = smul.addr %s218, 16
        %s220 = scalar_lea.vmem [#allocation2], %s219
        %s221 = smul.u32 4, %s21
        %p222 = scmp.lt.s32.totalorder %s22, 1
        %s223 = scalar_select %p222, %s22, 1
        %p224 = scmp.lt.s32.totalorder %s221, 3
        %s225 = scalar_select %p224, %s221, 3
        %s226 = smul.addr %s223, 4
        %s227 = sadd.s32 %s225, %s226
        %s228 = smul.addr %s227, 4
        %s229 = scalar_lea.vmem %s0, %s228
        %s230 = smul.u32 4, %s21
        %s231 = smul.u32 4, %s21
        %p232 = scmp.lt.s32.totalorder %s231, 3
        %s233 = scalar_select %p232, %s231, 3
        %s234 = smul.addr %s233, 4
        %s235 = scalar_lea.vmem %s1, %s234
        %s236 = smul.u32 4, %s21
        %s237 = smul.u32 4, %s21
        %p238 = scmp.lt.s32.totalorder %s237, 3
        %s239 = scalar_select %p238, %s237, 3
        %s240 = smul.addr %s239, 4
        %s241 = scalar_lea.vmem %s2, %s240
        %s242 = smul.u32 4, %s21
        %s243 = smul.u32 4, %s21
        %v244 = vld [vmem:[%s229] sm:$0xf]
        %v245 = vld [vmem:[%s229 + $0x4] sm:$0xf]
        %v246 = vld [vmem:[%s229 + $0x8] sm:$0xf]
        %v247 = vld [vmem:[%s229 + $0xc] sm:$0xf]
        %vm248 = vcmask 1043456
        %v249 = vsel %vm248, %v244, 0.0
        %250 = vadd.xlane.f32.xlu0 %v249
        %v251 = vpop.xlane.xlu0 %250
        %v252 = vsel %vm248, %v245, 0.0
        %253 = vadd.xlane.f32.xlu0 %v252
        %v254 = vpop.xlane.xlu0 %253
        %v255 = vsel %vm248, %v246, 0.0
        %256 = vadd.xlane.f32.xlu0 %v255
        %v257 = vpop.xlane.xlu0 %256
        %v258 = vsel %vm248, %v247, 0.0
        %259 = vadd.xlane.f32.xlu0 %v258
        %v260 = vpop.xlane.xlu0 %259
        %v261 = vsel %vm248, %v251, 0.0
        %v262 = vrot.slane %v261, 4
        %v263 = vadd.f32 %v261, %v262
        %v264 = vrot.slane %v263, 2
        %v265 = vadd.f32 %v263, %v264
        %v266 = vrot.slane %v265, 1
        %v267 = vadd.f32 %v265, %v266
        %v268 = vsel %vm248, %v254, 0.0
        %v269 = vrot.slane %v268, 4
        %v270 = vadd.f32 %v268, %v269
        %v271 = vrot.slane %v270, 2
        %v272 = vadd.f32 %v270, %v271
        %v273 = vrot.slane %v272, 1
        %v274 = vadd.f32 %v272, %v273
        %v275 = vsel %vm248, %v257, 0.0
        %v276 = vrot.slane %v275, 4
        %v277 = vadd.f32 %v275, %v276
        %v278 = vrot.slane %v277, 2
        %v279 = vadd.f32 %v277, %v278
        %v280 = vrot.slane %v279, 1
        %v281 = vadd.f32 %v279, %v280
        %v282 = vsel %vm248, %v260, 0.0
        %v283 = vrot.slane %v282, 4
        %v284 = vadd.f32 %v282, %v283
        %v285 = vrot.slane %v284, 2
        %v286 = vadd.f32 %v284, %v285
        %v287 = vrot.slane %v286, 1
        %v288 = vadd.f32 %v286, %v287
        %v289 = vmul.f32 %v244, %v244
        %v290 = vmul.f32 %v245, %v245
        %v291 = vmul.f32 %v246, %v246
        %v292 = vmul.f32 %v247, %v247
        %v293 = vsel %vm248, %v289, 0.0
        %294 = vadd.xlane.f32.xlu0 %v293
        %v295 = vpop.xlane.xlu0 %294
        %v296 = vsel %vm248, %v290, 0.0
        %297 = vadd.xlane.f32.xlu0 %v296
        %v298 = vpop.xlane.xlu0 %297
        %v299 = vsel %vm248, %v291, 0.0
        %300 = vadd.xlane.f32.xlu0 %v299
        %v301 = vpop.xlane.xlu0 %300
        %v302 = vsel %vm248, %v292, 0.0
        %303 = vadd.xlane.f32.xlu0 %v302
        %v304 = vpop.xlane.xlu0 %303
        %v305 = vsel %vm248, %v295, 0.0
        %v306 = vrot.slane %v305, 4
        %v307 = vadd.f32 %v305, %v306
        %v308 = vrot.slane %v307, 2
        %v309 = vadd.f32 %v307, %v308
        %v310 = vrot.slane %v309, 1
        %v311 = vadd.f32 %v309, %v310
        %v312 = vsel %vm248, %v298, 0.0
        %v313 = vrot.slane %v312, 4
        %v314 = vadd.f32 %v312, %v313
        %v315 = vrot.slane %v314, 2
        %v316 = vadd.f32 %v314, %v315
        %v317 = vrot.slane %v316, 1
        %v318 = vadd.f32 %v316, %v317
        %v319 = vsel %vm248, %v301, 0.0
        %v320 = vrot.slane %v319, 4
        %v321 = vadd.f32 %v319, %v320
        %v322 = vrot.slane %v321, 2
        %v323 = vadd.f32 %v321, %v322
        %v324 = vrot.slane %v323, 1
        %v325 = vadd.f32 %v323, %v324
        %v326 = vsel %vm248, %v304, 0.0
        %v327 = vrot.slane %v326, 4
        %v328 = vadd.f32 %v326, %v327
        %v329 = vrot.slane %v328, 2
        %v330 = vadd.f32 %v328, %v329
        %v331 = vrot.slane %v330, 1
        %v332 = vadd.f32 %v330, %v331
        %v333 = vmul.f32 %v267, 0.001953125
        %v334 = vmul.f32 %v274, 0.001953125
        %v335 = vmul.f32 %v281, 0.001953125
        %v336 = vmul.f32 %v288, 0.001953125
        %v337 = vmul.f32 %v311, 0.001953125
        %v338 = vmul.f32 %v318, 0.001953125
        %v339 = vmul.f32 %v325, 0.001953125
        %v340 = vmul.f32 %v332, 0.001953125
        %v341 = vmul.f32 %v333, %v333
        %v342 = vmul.f32 %v334, %v334
        %v343 = vmul.f32 %v335, %v335
        %v344 = vmul.f32 %v336, %v336
        %v345 = vsub.f32 %v337, %v341
        %v346 = vsub.f32 %v338, %v342
        %v347 = vsub.f32 %v339, %v343
        %v348 = vsub.f32 %v340, %v344
        %v349 = vmax.f32 %v345, 0.0
        %v350 = vmax.f32 %v346, 0.0
        %v351 = vmax.f32 %v347, 0.0
        %v352 = vmax.f32 %v348, 0.0
        %v353 = vadd.f32 %v349, 1e-06
        %v354 = vadd.f32 %v350, 1e-06
        %v355 = vadd.f32 %v351, 1e-06
        %v356 = vadd.f32 %v352, 1e-06
        %v357 = vrsqrt.pop %v353
        %v358 = vmul.f32 %v357, %v353
        %v359 = vmul.f32 %v358, %v357
        %v360 = vmul.f32 0.5, %v359
        %v361 = vsub.f32 1.5, %v360
        %v362 = vmul.f32 %v357, %v361
        %vm363 = vweird.f32 %v353
        %vm364 = vweird.f32 %v357
        %vm365 = vmor %vm363, %vm364
        %v366 = vsel %vm365, %v357, %v362
        %v367 = vrsqrt.pop %v354
        %v368 = vmul.f32 %v367, %v354
        %v369 = vmul.f32 %v368, %v367
        %v370 = vmul.f32 0.5, %v369
        %v371 = vsub.f32 1.5, %v370
        %v372 = vmul.f32 %v367, %v371
        %vm373 = vweird.f32 %v354
        %vm374 = vweird.f32 %v367
        %vm375 = vmor %vm373, %vm374
        %v376 = vsel %vm375, %v367, %v372
        %v377 = vrsqrt.pop %v355
        %v378 = vmul.f32 %v377, %v355
        %v379 = vmul.f32 %v378, %v377
        %v380 = vmul.f32 0.5, %v379
        %v381 = vsub.f32 1.5, %v380
        %v382 = vmul.f32 %v377, %v381
        %vm383 = vweird.f32 %v355
        %vm384 = vweird.f32 %v377
        %vm385 = vmor %vm383, %vm384
        %v386 = vsel %vm385, %v377, %v382
        %v387 = vrsqrt.pop %v356
        %v388 = vmul.f32 %v387, %v356
        %v389 = vmul.f32 %v388, %v387
        %v390 = vmul.f32 0.5, %v389
        %v391 = vsub.f32 1.5, %v390
        %v392 = vmul.f32 %v387, %v391
        %vm393 = vweird.f32 %v356
        %vm394 = vweird.f32 %v387
        %vm395 = vmor %vm393, %vm394
        %v396 = vsel %vm395, %v387, %v392
        %v397 = vld [vmem:[%s235] sm:$0xf]
        %v398 = vld [vmem:[%s235 + $0x4] sm:$0xf]
        %v399 = vld [vmem:[%s235 + $0x8] sm:$0xf]
        %v400 = vld [vmem:[%s235 + $0xc] sm:$0xf]
        %v401 = vld [vmem:[%s241] sm:$0xf]
        %v402 = vld [vmem:[%s241 + $0x4] sm:$0xf]
        %v403 = vld [vmem:[%s241 + $0x8] sm:$0xf]
        %v404 = vld [vmem:[%s241 + $0xc] sm:$0xf]
        %v405 = vmul.f32 %v366, %v397
        %v406 = vmul.f32 %v376, %v398
        %v407 = vmul.f32 %v386, %v399
        %v408 = vmul.f32 %v396, %v400
        %v409 = vmul.f32 %v333, %v405
        %v410 = vmul.f32 %v334, %v406
        %v411 = vmul.f32 %v335, %v407
        %v412 = vmul.f32 %v336, %v408
        %v413 = vsub.f32 %v401, %v409
        %v414 = vsub.f32 %v402, %v410
        %v415 = vsub.f32 %v403, %v411
        %v416 = vsub.f32 %v404, %v412
        %418 = vset.pattern.permute.xlu0 0
        %419 = vperm.xlu0 %418, %v405
        %v420 = vpop.permute.xlu0 %419
        %423 = vset.pattern.permute.xlu0 0
        %424 = vperm.xlu0 %423, %v406
        %v425 = vpop.permute.xlu0 %424
        %428 = vset.pattern.permute.xlu0 0
        %429 = vperm.xlu0 %428, %v407
        %v430 = vpop.permute.xlu0 %429
        %433 = vset.pattern.permute.xlu0 0
        %434 = vperm.xlu0 %433, %v408
        %v435 = vpop.permute.xlu0 %434
        %v437 = vmul.f32 %v244, %v420
        %v438 = vmul.f32 %v245, %v425
        %v439 = vmul.f32 %v246, %v430
        %v440 = vmul.f32 %v247, %v435
        %442 = vset.pattern.permute.xlu0 0
        %443 = vperm.xlu0 %442, %v413
        %v444 = vpop.permute.xlu0 %443
        %447 = vset.pattern.permute.xlu0 0
        %448 = vperm.xlu0 %447, %v414
        %v449 = vpop.permute.xlu0 %448
        %452 = vset.pattern.permute.xlu0 0
        %453 = vperm.xlu0 %452, %v415
        %v454 = vpop.permute.xlu0 %453
        %457 = vset.pattern.permute.xlu0 0
        %458 = vperm.xlu0 %457, %v416
        %v459 = vpop.permute.xlu0 %458
        %v461 = vadd.f32 %v437, %v444
        %v462 = vadd.f32 %v438, %v449
        %v463 = vadd.f32 %v439, %v454
        %v464 = vadd.f32 %v440, %v459
        %465 = vst [vmem:[%s220] sm:$0xf] %v461
        %466 = vst [vmem:[%s220 + $0x4] sm:$0xf] %v462
        %467 = vst [vmem:[%s220 + $0x8] sm:$0xf] %v463
        %468 = vst [vmem:[%s220 + $0xc] sm:$0xf] %v464
        %s469 = sand.u32 %s119, 1
        %s470 = scalar_lea.sflag [#allocation3], %s469
        %s471 = sand.u32 %s119, 1
        %s472 = smul.addr %s471, 16
        %s473 = scalar_lea.vmem [#allocation2], %s472
        // Predicated region
        $region33: #{tpu_custom_call.1} parent=31 // pred_check
          %p474 = pneg %p129
        $region34: #{tpu_custom_call.1} parent=31 // pred_check_branch
          %476 = sbr.rel (%p474) target = $region36
        $region35: #{tpu_custom_call.1} parent=31 // pred_region
          %s477 = smul.u32 4, %s21
          %479 = vsyncadd %s470, 0
          %s480 = smul.addr %s22, 4
          %s481 = sadd.s32 %s477, %s480
          %s482 = smul.addr %s481, 4
          %s483 = scalar_lea.hbm %s3, %s482
          %s484 = sshll.u32 %s473, 4
          %s485 = int_to_ptr.vmem [resolvable:$true] %s484
          %s486 = sshll.u32 %s483, 4
          %s487 = int_to_ptr.hbm [resolvable:$true] %s486
          %492 = dma.vmem_to_hbm [thread:$0]  %s485, 256, %s487, %s470, 64, 64, 4
        $region36: #{tpu_custom_call.1} parent=31 // pred_fallthru
          _
      $region32: #{tpu_custom_call.1} parent=5 // pred_fallthru
        _
      %p493 = scmp.le.s32.totalorder 2, %s12
      // Predicated region
      $region37: #{tpu_custom_call.1} parent=5 // pred_check
        %p494 = pneg %p493
      $region38: #{tpu_custom_call.1} parent=5 // pred_check_branch
        %496 = sbr.rel (%p494) target = $region40
      $region39: #{tpu_custom_call.1} parent=5 // pred_region
        %s497 = ssub.s32 %s12, 2
        // Predicated region
        $region41: #{tpu_custom_call.1} parent=39 // pred_check
          %p498 = pneg %p135
        $region42: #{tpu_custom_call.1} parent=39 // pred_check_branch
          %500 = sbr.rel (%p498) target = $region44
        $region43: #{tpu_custom_call.1} parent=39 // pred_region
          %s501 = sand.u32 %s120, 1
          %s502 = scalar_lea.sflag [#allocation3], %s501
          %s503 = sand.u32 %s120, 1
          %s504 = smul.addr %s503, 16
          %s505 = scalar_lea.vmem [#allocation2], %s504
          %507 = dma.done %s502, 256
        $region44: #{tpu_custom_call.1} parent=39 // pred_fallthru
          _
      $region40: #{tpu_custom_call.1} parent=5 // pred_fallthru
        _
    $region6: #{tpu_custom_call.1} parent=1 // loop_footer
      %s16 = sadd.s32 1, %s12
    $region7: #{tpu_custom_call.1} parent=1 // loop_footer_branch
      %11 = sbr.rel target = $region3
    $region8: #{tpu_custom_call.1} parent=1 // loop_exit
      _
    %508 = vsyncpa [#allocation3], 1
    %s509 = scalar_lea.sflag [#allocation3], 1
    %510 = vsyncpa %s509, 1

</llo_original>
